<compile_context>
chip_gen: v6e
topology: v6e:2x2x1
jax: 0.10.0
libtpu: 0.0.40
codegen_flags: <defaults>
</compile_context>

<pallas_src>
import functools

import jax
import jax.numpy as jnp
from jax.experimental import pallas as pl
from jax.experimental.pallas import tpu as pltpu

_MIB = 1024 * 1024


def _vmem_capacity_bytes():
    """Physical VMEM per TensorCore; conservative (v7x-sized) fallback."""
    try:
        cap = getattr(pltpu.get_tpu_info(), "vmem_capacity_bytes", None)
        if cap:
            return int(cap)
    except Exception:
        pass
    return 64 * _MIB


def _soft_ce_kernel(x_ref, t_ref, out_ref, *, tb, n_rows, needs_mask):
    x = x_ref[...].astype(jnp.float32)   # (tb, C), upcast in-register
    t = t_ref[...].astype(jnp.float32)   # (tb, C)

    # Numerically-stable log-softmax pieces along the class (lane) axis.
    m = jnp.max(x, axis=-1, keepdims=True)                              # (tb, 1)
    lse = jnp.log(jnp.sum(jnp.exp(x - m), axis=-1, keepdims=True))      # (tb, 1)

    # Single class-axis reduction; exact and better conditioned than the
    # factored (m+lse)*sum(t) - sum(t*x) form (no cancellation of two large
    # terms), and one fewer XLU lane-reduce per row group.
    # TODO(synk): if a bundle dump shows the VPU saturating (v7x + bf16 inputs),
    # move this reduce and the exp-sum above onto the idle MXU as
    # (tb,C) @ ones(C,.) matmuls with preferred_element_type=f32.
    loss_rows = jnp.sum(t * ((m + lse) - x), axis=-1, keepdims=True)    # (tb, 1)

    if needs_mask:
        # Ragged last tile: mask only the (tb,1) per-row results. NaN/Inf-safe:
        # all reductions above are per-row, so garbage in padded rows cannot
        # leak into valid rows, and where(False, NaN, 0) == 0. Costs ~tb/8
        # vregs of selects instead of 2 full-tile selects on every step.
        row = (jax.lax.broadcasted_iota(jnp.int32, (tb, 1), 0)
               + pl.program_id(0) * tb)
        loss_rows = jnp.where(row < n_rows, loss_rows, 0.0)

    # Broadcast the block partial sum over a lane-dense (8,128) output block
    # (unmasked store); the host reads element [0, 0] of each block.
    partial = jnp.sum(loss_rows)
    out_ref[...] = jnp.broadcast_to(partial, out_ref.shape)


def _choose_tb(n_rows, n_classes, itemsize_min, itemsize_max, vmem_budget_bytes,
               buffer_count, min_blocks=4):
    """Pick a batch tile so the per-step VMEM footprint fits the budget.

    Footprint model per grid step:
      pipeline buffers : 2 inputs * buffer_count * tb * C * itemsize
      f32 body temps   : ~4 live (tb, C) f32 tiles (x/t upcasts, exp, product)
    Also caps tb so there are >= min_blocks grid steps (restores DMA/compute
    overlap and gives v7x >= 2 blocks per TensorCore).
    """
    # Sublane granularity of the narrowest input dtype: f32->8, bf16->16, i8->32.
    sublane = 8 * max(1, 4 // max(1, itemsize_min))

    per_row = n_classes * (2 * buffer_count * itemsize_max + 4 * 4)
    cand = max(sublane, min(int(vmem_budget_bytes // per_row), 2048))
    cand = max(sublane, (cand // sublane) * sublane)

    if n_rows > sublane:
        want = max(sublane, -(-n_rows // min_blocks))   # ceil(N / min_blocks)
        want = -(-want // sublane) * sublane            # round up to sublane
        cand = min(cand, want)

    if n_rows <= cand:
        return n_rows   # tiny batch: a single full-extent block is always legal
    return cand


def soft_target_cross_entropy(x, target, *, tb=None, compute_dtype=None,
                              vmem_budget_bytes=None, buffer_count=None):
    """Soft-target cross entropy: mean_rows(sum_c(-target * log_softmax(x))).

    x, target: (N, C). Returns a float32 scalar.

    compute_dtype: optionally cast both inputs (e.g. jnp.bfloat16) before the
      kernel. The op is HBM-bandwidth-bound, so bf16 inputs ~halve wall time on
      v5e/v6e; accumulation inside the kernel is always f32.
    """
    N, C = x.shape
    assert target.shape == (N, C), (x.shape, target.shape)

    if compute_dtype is not None:
        x = x.astype(compute_dtype)
        target = target.astype(compute_dtype)

    isz_x = jnp.dtype(x.dtype).itemsize
    isz_t = jnp.dtype(target.dtype).itemsize
    itemsize_max = max(isz_x, isz_t)
    itemsize_min = min(isz_x, isz_t)

    capacity = _vmem_capacity_bytes()
    if buffer_count is None:
        # 3-deep input pipelining on big-VMEM chips (v5e/v6e: 128 MiB); keep
        # default double-buffering on v7x (64 MiB per TC).
        buffer_count = 3 if capacity >= 96 * _MIB else 2
    if vmem_budget_bytes is None:
        vmem_budget_bytes = min(16 * _MIB, capacity // 6)
    if tb is None:
        tb = _choose_tb(N, C, itemsize_min, itemsize_max, vmem_budget_bytes,
                        buffer_count)

    n_blocks = pl.cdiv(N, tb)
    needs_mask = (N % tb) != 0

    # VMEM limit from the *total* per-step footprint (pipeline buffers + f32
    # body temporaries + output blocks), 2x slack, clamped to 3/4 of physical.
    pipeline_bytes = 2 * buffer_count * tb * C * itemsize_max
    body_bytes = 4 * tb * C * 4
    out_bytes = 2 * 8 * 128 * 4
    needed = pipeline_bytes + body_bytes + out_bytes
    vmem_limit = int(min(max(2 * needed, 32 * _MIB),
                         max(32 * _MIB, capacity * 3 // 4)))

    kernel = functools.partial(_soft_ce_kernel, tb=tb, n_rows=N,
                               needs_mask=needs_mask)

    cost = pl.CostEstimate(
        flops=6 * N * C,
        transcendentals=N * C,
        bytes_accessed=2 * N * C * itemsize_max + n_blocks * 8 * 128 * 4,
    )

    def _call(bc):
        if bc > 2:
            in_spec = pl.BlockSpec((tb, C), lambda i: (i, 0),
                                   pipeline_mode=pl.Buffered(bc))
        else:
            in_spec = pl.BlockSpec((tb, C), lambda i: (i, 0))
        return pl.pallas_call(
            kernel,
            out_shape=jax.ShapeDtypeStruct((n_blocks, 8, 128), jnp.float32),
            grid_spec=pltpu.PrefetchScalarGridSpec(
                num_scalar_prefetch=0,
                grid=(n_blocks,),
                in_specs=[in_spec, in_spec],
                # Each step owns a disjoint lane-dense (8,128) block -> the grid
                # axis is safely "parallel" (uses both v7x TensorCores).
                # TODO(synk): on single-TC chips (v5e/v6e) a resident accumulator
                # block ("arbitrary" axis) would save n_blocks x 4 KiB writebacks
                # plus the follow-up XLA reduce; kept per-block to preserve v7x
                # dual-TC sharding.
                out_specs=pl.BlockSpec((1, 8, 128), lambda i: (i, 0, 0)),
            ),
            compiler_params=pltpu.CompilerParams(
                dimension_semantics=("parallel",),
                vmem_limit_bytes=vmem_limit,
            ),
            cost_estimate=cost,
        )(x, target)

    if buffer_count > 2:
        try:
            partials = _call(buffer_count)
        except Exception:
            # Compatibility guard: fall back to default double-buffering if this
            # Pallas build rejects pipeline_mode=pl.Buffered(n).
            partials = _call(2)
    else:
        partials = _call(buffer_count)

    return jnp.sum(partials[:, 0, 0]) / jnp.float32(N)


def _reference(x, target):
    logp = jax.nn.log_softmax(x.astype(jnp.float32), axis=-1)
    return jnp.mean(jnp.sum(-target.astype(jnp.float32) * logp, axis=-1))


if __name__ == "__main__":
    key = jax.random.PRNGKey(0)
    kx, kt = jax.random.split(key)

    # Soft-labeled batch: logits (N, C) + per-row probability targets.
    N, C = 16, 128
    x = jax.random.normal(kx, (N, C), dtype=jnp.float32)
    target = jax.nn.softmax(jax.random.normal(kt, (N, C), dtype=jnp.float32), axis=-1)

    loss = jax.block_until_ready(soft_target_cross_entropy(x, target))
    ref = jax.block_until_ready(_reference(x, target))
    assert jnp.allclose(loss, ref, rtol=1e-5, atol=1e-5), (loss, ref)

    # Multi-block + ragged (masked) last-tile path.
    N2 = 50
    x2 = jax.random.normal(jax.random.PRNGKey(1), (N2, C), dtype=jnp.float32)
    t2 = jax.nn.softmax(
        jax.random.normal(jax.random.PRNGKey(2), (N2, C), dtype=jnp.float32), axis=-1)
    loss2 = jax.block_until_ready(soft_target_cross_entropy(x2, t2, tb=16))
    ref2 = jax.block_until_ready(_reference(x2, t2))
    assert jnp.allclose(loss2, ref2, rtol=1e-5, atol=1e-5), (loss2, ref2)

    # bf16 input path (halves HBM traffic; in-kernel accumulation stays f32).
    loss3 = jax.block_until_ready(
        soft_target_cross_entropy(x2, t2, compute_dtype=jnp.bfloat16))
    ref3 = jax.block_until_ready(
        _reference(x2.astype(jnp.bfloat16), t2.astype(jnp.bfloat16)))
    assert jnp.allclose(loss3, ref3, rtol=5e-2, atol=5e-2), (loss3, ref3)

    print("KERNEL_OK")
</pallas_src>

<mosaic_0001>
module attributes {stable_mosaic.version = 11 : i64} {
  func.func @_soft_ce_kernel(%arg0: i32, %arg1: memref<8x128xf32, #tpu.memory_space<vmem>>, %arg2: memref<8x128xf32, #tpu.memory_space<vmem>>, %arg3: memref<1x8x128xf32, #tpu.memory_space<vmem>>) attributes {dimension_semantics = [#tpu.dimension_semantics<parallel>], iteration_bounds = array<i64: 2>, scalar_prefetch = 0 : i64, scratch_operands = 0 : i64, tpu.core_type = #tpu.core_type<tc>, window_params = [{transform_indices = @transform_0, window_bounds = array<i64: 8, 128>}, {transform_indices = @transform_1, window_bounds = array<i64: 8, 128>}, {transform_indices = @transform_2, window_bounds = array<i64: 1, 8, 128>}]} {
    %c0 = arith.constant 0 : index
    %c0_0 = arith.constant 0 : index
    %0 = vector.load %arg1[%c0, %c0_0] : memref<8x128xf32, #tpu.memory_space<vmem>>, vector<8x128xf32>
    %c0_1 = arith.constant 0 : index
    %c0_2 = arith.constant 0 : index
    %1 = vector.load %arg2[%c0_1, %c0_2] : memref<8x128xf32, #tpu.memory_space<vmem>>, vector<8x128xf32>
    %cst = arith.constant dense<0xFF800000> : vector<8xf32>
    %2 = vector.multi_reduction <maximumf>, %0, %cst [1] : vector<8x128xf32> to vector<8xf32>
    %3 = vector.shape_cast %2 : vector<8xf32> to vector<8x1xf32>
    %4 = vector.broadcast %3 : vector<8x1xf32> to vector<8x128xf32>
    %5 = arith.subf %0, %4 : vector<8x128xf32>
    %6 = math.exp %5 : vector<8x128xf32>
    %cst_3 = arith.constant dense<0.000000e+00> : vector<8xf32>
    %7 = vector.multi_reduction <add>, %6, %cst_3 [1] : vector<8x128xf32> to vector<8xf32>
    %8 = vector.shape_cast %7 : vector<8xf32> to vector<8x1xf32>
    %9 = math.log %8 : vector<8x1xf32>
    %10 = arith.addf %3, %9 : vector<8x1xf32>
    %11 = vector.broadcast %10 : vector<8x1xf32> to vector<8x128xf32>
    %12 = arith.subf %11, %0 : vector<8x128xf32>
    %13 = arith.mulf %1, %12 : vector<8x128xf32>
    %cst_4 = arith.constant dense<0.000000e+00> : vector<8xf32>
    %14 = vector.multi_reduction <add>, %13, %cst_4 [1] : vector<8x128xf32> to vector<8xf32>
    %15 = vector.shape_cast %14 : vector<8xf32> to vector<8x1xf32>
    %16 = vector.shape_cast %15 : vector<8x1xf32> to vector<1x8x1xf32>
    %cst_5 = arith.constant dense<0.000000e+00> : vector<1xf32>
    %17 = vector.multi_reduction <add>, %16, %cst_5 [1, 2] : vector<1x8x1xf32> to vector<1xf32>
    %18 = vector.shape_cast %17 : vector<1xf32> to vector<1x1x1xf32>
    %19 = vector.extract %18[0, 0, 0] : f32 from vector<1x1x1xf32>
    %20 = vector.broadcast %19 : f32 to vector<1x8x128xf32>
    %c0_6 = arith.constant 0 : index
    %c0_7 = arith.constant 0 : index
    %c0_8 = arith.constant 0 : index
    %21 = vector.load %arg3[%c0_6, %c0_7, %c0_8] : memref<1x8x128xf32, #tpu.memory_space<vmem>>, vector<1x8x128xf32>
    tpu.vector_store %arg3[%c0_6, %c0_7, %c0_8], %20 {strides = array<i32>} : memref<1x8x128xf32, #tpu.memory_space<vmem>>, vector<1x8x128xf32>,
    return
  }
  func.func @transform_0(%arg0: i32) -> (i32, i32) {
    %c0_i32 = arith.constant 0 : i32
    %c0_i32_0 = arith.constant 0 : i32
    return %arg0, %c0_i32 : i32, i32
  }
  func.func @transform_1(%arg0: i32) -> (i32, i32) {
    %c0_i32 = arith.constant 0 : i32
    %c0_i32_0 = arith.constant 0 : i32
    return %arg0, %c0_i32 : i32, i32
  }
  func.func @transform_2(%arg0: i32) -> (i32, i32, i32) {
    %c0_i32 = arith.constant 0 : i32
    %c0_i32_0 = arith.constant 0 : i32
    %c0_i32_1 = arith.constant 0 : i32
    return %arg0, %c0_i32, %c0_i32_0 : i32, i32, i32
  }
}

</mosaic_0001>

<llo_original>
// kernel: tpu_custom_call.1
$region0: #{tpu_custom_call.1}
  #allocation0 [shape = 'u32[]', space=smem, size = 0x4, offset = 0x4, fixed_abs, tag = 'smem constant byte address 0x4 - core index']
  #allocation1 [shape = 'u32[144,128]{1,0:T(1,128)}', space=vmem, size = 0x12000, scoped, tag = 'internal scratch']
  %s0 = inlined_call_operand.hbm [shape: f32[16,128], index: 0, kind: input, shape index: {}]
  %s1 = inlined_call_operand.hbm [shape: f32[16,128], index: 1, kind: input, shape index: {}]
  %s2 = inlined_call_operand.hbm [shape: f32[2,8,128], index: 2, kind: output, shape index: {}]
  %s3 = sld [smem:[#allocation0]]
  $region49: #{tpu_custom_call.1} parent=0
    _
  %s5 = ssub.s32 1, %s3
  %s6 = scalar_select 0, %s5, %s3
  $region1: #{tpu_custom_call.1} parent=0
    #allocation2 [shape = 'u8[8192]{0}', space=vmem, size = 0x2000, scoped, tag = 'input window, operand 0']
    #allocation3 [shape = 's32[2]{0}', space=sflag, size = 0x8, scoped, tag = 'scoped memory for tpu_custom_call.1']
    #allocation4 [shape = 's32[2]{0}', space=sflag, size = 0x8, scoped, tag = 'scoped memory for tpu_custom_call.1']
    #allocation5 [shape = 'u8[8192]{0}', space=vmem, size = 0x2000, scoped, tag = 'input window, operand 1']
    #allocation6 [shape = 's32[2]{0}', space=sflag, size = 0x8, scoped, tag = 'scoped memory for tpu_custom_call.1']
    #allocation7 [shape = 'u8[8192]{0}', space=vmem, size = 0x2000, scoped, tag = 'output window, operand 0']
    %7 = vsyncpa [#allocation3], 0
    %s8 = scalar_lea.sflag [#allocation3], 1
    %9 = vsyncpa %s8, 0
    %10 = vsyncpa [#allocation6], 0
    %s11 = scalar_lea.sflag [#allocation6], 1
    %12 = vsyncpa %s11, 0
    %13 = vsyncpa [#allocation4], 0
    %s14 = scalar_lea.sflag [#allocation4], 1
    %15 = vsyncpa %s14, 0
    loop: start=0, step=1, limit=4
    $region2: #{tpu_custom_call.1} parent=1 // loop_pre_header
      _
    $region3: #{tpu_custom_call.1} parent=1 // loop_header
      %s17 = sphi 0, %s21
      %p18 = scmp.ge.s32.totalorder %s17, 4
      %s27 = sphi 0, %s29
      %s30 = sphi 0, %s27
      %s31 = sphi 0, %s30
      %s47 = sphi 0, %s31
      %s53 = sphi 0, %s55
      %s56 = sphi 0, %s53
      %s57 = sphi 0, %s56
      %s73 = sphi 0, %s57
      %s79 = sphi 0, %s81
      %s82 = sphi 0, %s79
      %s83 = sphi 0, %s82
      %s99 = sphi 0, %s83
    $region4: #{tpu_custom_call.1} parent=1 // loop_header_branch
      %20 = sbr.rel (%p18) target = $region8
    $region5: #{tpu_custom_call.1} parent=1 // loop_body
      %s22 = ssub.s32 %s17, 1
      %s23 = ssub.s32 %s17, 2
      %s24 = sadd.s32 %s17, 1
      %s25 = ssub.s32 %s17, %s24
      %p26 = scmp.eq.s32.totalorder %s25, 0
      %s28 = sadd.s32 %s27, 1
      %s29 = scalar_select %p26, %s27, %s28
      %p32 = pneg %p26
      %p33 = scmp.eq.s32.totalorder %s17, 1
      %p34 = por %p32, %p33
      %p35 = scmp.ne.s32.totalorder %s27, %s30
      %p36 = scmp.eq.s32.totalorder %s17, 0
      %p37 = por %p35, %p36
      %p38 = scmp.ne.s32.totalorder %s27, %s30
      %p39 = scmp.eq.s32.totalorder %s22, 1
      %p40 = por %p38, %p39
      %p41 = scmp.ne.s32.totalorder %s30, %s31
      %p42 = scmp.eq.s32.totalorder %s22, 0
      %p43 = por %p41, %p42
      %p44 = scmp.ne.s32.totalorder %s30, %s31
      %p45 = scmp.eq.s32.totalorder %s23, 1
      %p46 = por %p44, %p45
      %p48 = scmp.ne.s32.totalorder %s31, %s47
      %p49 = scmp.eq.s32.totalorder %s23, 0
      %p50 = por %p48, %p49
      %s51 = ssub.s32 %s17, %s24
      %p52 = scmp.eq.s32.totalorder %s51, 0
      %s54 = sadd.s32 %s53, 1
      %s55 = scalar_select %p52, %s53, %s54
      %p58 = pneg %p52
      %p59 = scmp.eq.s32.totalorder %s17, 1
      %p60 = por %p58, %p59
      %p61 = scmp.ne.s32.totalorder %s53, %s56
      %p62 = scmp.eq.s32.totalorder %s17, 0
      %p63 = por %p61, %p62
      %p64 = scmp.ne.s32.totalorder %s53, %s56
      %p65 = scmp.eq.s32.totalorder %s22, 1
      %p66 = por %p64, %p65
      %p67 = scmp.ne.s32.totalorder %s56, %s57
      %p68 = scmp.eq.s32.totalorder %s22, 0
      %p69 = por %p67, %p68
      %p70 = scmp.ne.s32.totalorder %s56, %s57
      %p71 = scmp.eq.s32.totalorder %s23, 1
      %p72 = por %p70, %p71
      %p74 = scmp.ne.s32.totalorder %s57, %s73
      %p75 = scmp.eq.s32.totalorder %s23, 0
      %p76 = por %p74, %p75
      %s77 = ssub.s32 %s17, %s24
      %p78 = scmp.eq.s32.totalorder %s77, 0
      %s80 = sadd.s32 %s79, 1
      %s81 = scalar_select %p78, %s79, %s80
      %p84 = pneg %p78
      %p85 = scmp.eq.s32.totalorder %s17, 1
      %p86 = por %p84, %p85
      %p87 = scmp.ne.s32.totalorder %s79, %s82
      %p88 = scmp.eq.s32.totalorder %s17, 0
      %p89 = por %p87, %p88
      %p90 = scmp.ne.s32.totalorder %s79, %s82
      %p91 = scmp.eq.s32.totalorder %s22, 1
      %p92 = por %p90, %p91
      %p93 = scmp.ne.s32.totalorder %s82, %s83
      %p94 = scmp.eq.s32.totalorder %s22, 0
      %p95 = por %p93, %p94
      %p96 = scmp.ne.s32.totalorder %s82, %s83
      %p97 = scmp.eq.s32.totalorder %s23, 1
      %p98 = por %p96, %p97
      %p100 = scmp.ne.s32.totalorder %s83, %s99
      %p101 = scmp.eq.s32.totalorder %s23, 0
      %p102 = por %p100, %p101
      %p103 = scmp.le.s32.totalorder 1, %s17
      %p104 = scmp.lt.s32.totalorder %s17, 3
      %p105 = pnand %p103, %p104
      %p106 = pneg %p105
      // Predicated region
      $region9: #{tpu_custom_call.1} parent=5 // pred_check
        _
      $region10: #{tpu_custom_call.1} parent=5 // pred_check_branch
        %108 = sbr.rel (%p105) target = $region12
      $region11: #{tpu_custom_call.1} parent=5 // pred_region
        %s109 = ssub.s32 %s17, 1
      $region12: #{tpu_custom_call.1} parent=5 // pred_fallthru
        _
      %p110 = scmp.lt.s32.totalorder %s17, 2
      // Predicated region
      $region13: #{tpu_custom_call.1} parent=5 // pred_check
        %p111 = pneg %p110
      $region14: #{tpu_custom_call.1} parent=5 // pred_check_branch
        %113 = sbr.rel (%p111) target = $region16
      $region15: #{tpu_custom_call.1} parent=5 // pred_region
        // Predicated region
        $region17: #{tpu_custom_call.1} parent=15 // pred_check
          %p114 = pneg %p37
        $region18: #{tpu_custom_call.1} parent=15 // pred_check_branch
          %116 = sbr.rel (%p114) target = $region20
        $region19: #{tpu_custom_call.1} parent=15 // pred_region
          %s117 = sand.u32 %s27, 1
          %s118 = scalar_lea.sflag [#allocation3], %s117
          %s119 = sand.u32 %s27, 1
          %s120 = smul.addr %s119, 8
          %s121 = scalar_lea.vmem [#allocation2], %s120
          %s123 = ssub.s32 128, 128
          %124 = vsyncadd %s118, %s123
          %s125 = smul.addr %s17, 128
          %s126 = scalar_lea.hbm %s0, %s125
          %s128 = sshll.u32 %s121, 4
          %s129 = int_to_ptr.vmem [resolvable:$true] %s128
          %131 = dma.hbm_to_vmem [thread:$0]  %s126, 128, %s129, %s118
        $region20: #{tpu_custom_call.1} parent=15 // pred_fallthru
          _
        // Predicated region
        $region21: #{tpu_custom_call.1} parent=15 // pred_check
          %p132 = pneg %p63
        $region22: #{tpu_custom_call.1} parent=15 // pred_check_branch
          %134 = sbr.rel (%p132) target = $region24
        $region23: #{tpu_custom_call.1} parent=15 // pred_region
          %s135 = sand.u32 %s53, 1
          %s136 = scalar_lea.sflag [#allocation6], %s135
          %s137 = sand.u32 %s53, 1
          %s138 = smul.addr %s137, 8
          %s139 = scalar_lea.vmem [#allocation5], %s138
          %s141 = ssub.s32 128, 128
          %142 = vsyncadd %s136, %s141
          %s143 = smul.addr %s17, 128
          %s144 = scalar_lea.hbm %s1, %s143
          %s146 = sshll.u32 %s139, 4
          %s147 = int_to_ptr.vmem [resolvable:$true] %s146
          %149 = dma.hbm_to_vmem [thread:$0]  %s144, 128, %s147, %s136
        $region24: #{tpu_custom_call.1} parent=15 // pred_fallthru
          _
      $region16: #{tpu_custom_call.1} parent=5 // pred_fallthru
        _
      %p150 = scmp.le.s32.totalorder 1, %s17
      %p151 = scmp.lt.s32.totalorder %s17, 3
      %p152 = pnand %p150, %p151
      %p153 = pneg %p152
      // Predicated region
      $region25: #{tpu_custom_call.1} parent=5 // pred_check
        _
      $region26: #{tpu_custom_call.1} parent=5 // pred_check_branch
        %155 = sbr.rel (%p152) target = $region28
      $region27: #{tpu_custom_call.1} parent=5 // pred_region
        %s156 = ssub.s32 %s17, 1
        %s157 = sand.u32 %s30, 1
        %s158 = scalar_lea.sflag [#allocation3], %s157
        %s159 = sand.u32 %s30, 1
        %s160 = smul.addr %s159, 8
        %s161 = scalar_lea.vmem [#allocation2], %s160
        // Predicated region
        $region29: #{tpu_custom_call.1} parent=27 // pred_check
          %p162 = pneg %p43
        $region30: #{tpu_custom_call.1} parent=27 // pred_check_branch
          %164 = sbr.rel (%p162) target = $region32
        $region31: #{tpu_custom_call.1} parent=27 // pred_region
          %165 = dma.done %s158, 128
        $region32: #{tpu_custom_call.1} parent=27 // pred_fallthru
          _
        %s166 = sand.u32 %s56, 1
        %s167 = scalar_lea.sflag [#allocation6], %s166
        %s168 = sand.u32 %s56, 1
        %s169 = smul.addr %s168, 8
        %s170 = scalar_lea.vmem [#allocation5], %s169
        // Predicated region
        $region33: #{tpu_custom_call.1} parent=27 // pred_check
          %p171 = pneg %p69
        $region34: #{tpu_custom_call.1} parent=27 // pred_check_branch
          %173 = sbr.rel (%p171) target = $region36
        $region35: #{tpu_custom_call.1} parent=27 // pred_region
          %174 = dma.done %s167, 128
        $region36: #{tpu_custom_call.1} parent=27 // pred_fallthru
          _
        %s175 = sand.u32 %s30, 1
        %s176 = scalar_lea.sflag [#allocation3], %s175
        %s177 = sand.u32 %s30, 1
        %s178 = smul.addr %s177, 8
        %s179 = scalar_lea.vmem [#allocation2], %s178
        %p180 = pneg %p43
        %p181 = pneg %p40
        %s182 = sand.u32 %s56, 1
        %s183 = scalar_lea.sflag [#allocation6], %s182
        %s184 = sand.u32 %s56, 1
        %s185 = smul.addr %s184, 8
        %s186 = scalar_lea.vmem [#allocation5], %s185
        %p187 = pneg %p69
        %p188 = pneg %p66
        %p189 = pneg %p95
        %p190 = pneg %p92
        %s191 = sand.u32 %s82, 1
        %s192 = scalar_lea.sflag [#allocation4], %s191
        %s193 = sand.u32 %s82, 1
        %s194 = smul.addr %s193, 8
        %s195 = scalar_lea.vmem [#allocation7], %s194
        %v196 = vld [vmem:[%s161] sm:$0xff]
        %v197 = vld [vmem:[%s170] sm:$0xff]
        %198 = vmax.xlane.f32.xlu0 %v196
        %v199 = vpop.xlane.xlu0 %198
        %v200 = vsub.f32 %v196, %v199
        %v201 = vmul.f32 %v200, 1.442695
        %v202 = vpow.pop %v201
        %203 = vadd.xlane.f32.xlu0 %v202
        %v204 = vpop.xlane.xlu0 %203
        %v205 = vlog2.pop %v204
        %v206 = vmul.f32 %v205, 0.6931472
        %v207 = vadd.f32 %v199, %v206
        %v208 = vsub.f32 %v207, %v196
        %v209 = vmul.f32 %v197, %v208
        %210 = vadd.xlane.f32.xlu0 %v209
        %v211 = vpop.xlane.xlu0 %210
        %vm212 = vcmask 7168
        %v213 = vsel %vm212, %v211, 0.0
        %214 = vadd.xlane.f32.xlu0 %v213
        %v215 = vpop.xlane.xlu0 %214
        %v216 = vrot.slane %v215, 4
        %v217 = vadd.f32 %v215, %v216
        %v218 = vrot.slane %v217, 2
        %v219 = vadd.f32 %v217, %v218
        %v220 = vrot.slane %v219, 1
        %v221 = vadd.f32 %v219, %v220
        %s222 = vtos %v221
        %v223 = vstv %s222
        %224 = vst [vmem:[%s195] sm:$0xff] %v223
        %s225 = sand.u32 %s82, 1
        %s226 = scalar_lea.sflag [#allocation4], %s225
        %s227 = sand.u32 %s82, 1
        %s228 = smul.addr %s227, 8
        %s229 = scalar_lea.vmem [#allocation7], %s228
        // Predicated region
        $region37: #{tpu_custom_call.1} parent=27 // pred_check
          %p230 = pneg %p92
        $region38: #{tpu_custom_call.1} parent=27 // pred_check_branch
          %232 = sbr.rel (%p230) target = $region40
        $region39: #{tpu_custom_call.1} parent=27 // pred_region
          %s234 = ssub.s32 128, 128
          %235 = vsyncadd %s226, %s234
          %s236 = smul.addr %s22, 128
          %s237 = scalar_lea.hbm %s2, %s236
          %s239 = sshll.u32 %s229, 4
          %s240 = int_to_ptr.vmem [resolvable:$true] %s239
          %242 = dma.vmem_to_hbm [thread:$0]  %s240, 128, %s237, %s226
        $region40: #{tpu_custom_call.1} parent=27 // pred_fallthru
          _
      $region28: #{tpu_custom_call.1} parent=5 // pred_fallthru
        _
      %p243 = scmp.le.s32.totalorder 2, %s17
      // Predicated region
      $region41: #{tpu_custom_call.1} parent=5 // pred_check
        %p244 = pneg %p243
      $region42: #{tpu_custom_call.1} parent=5 // pred_check_branch
        %246 = sbr.rel (%p244) target = $region44
      $region43: #{tpu_custom_call.1} parent=5 // pred_region
        %s247 = ssub.s32 %s17, 2
        // Predicated region
        $region45: #{tpu_custom_call.1} parent=43 // pred_check
          %p248 = pneg %p98
        $region46: #{tpu_custom_call.1} parent=43 // pred_check_branch
          %250 = sbr.rel (%p248) target = $region48
        $region47: #{tpu_custom_call.1} parent=43 // pred_region
          %s251 = sand.u32 %s83, 1
          %s252 = scalar_lea.sflag [#allocation4], %s251
          %s253 = sand.u32 %s83, 1
          %s254 = smul.addr %s253, 8
          %s255 = scalar_lea.vmem [#allocation7], %s254
          %256 = dma.done %s252, 128
        $region48: #{tpu_custom_call.1} parent=43 // pred_fallthru
          _
      $region44: #{tpu_custom_call.1} parent=5 // pred_fallthru
        _
    $region6: #{tpu_custom_call.1} parent=1 // loop_footer
      %s21 = sadd.s32 1, %s17
    $region7: #{tpu_custom_call.1} parent=1 // loop_footer_branch
      %16 = sbr.rel target = $region3
    $region8: #{tpu_custom_call.1} parent=1 // loop_exit
      _
    %257 = vsyncpa [#allocation3], 1
    %s258 = scalar_lea.sflag [#allocation3], 1
    %259 = vsyncpa %s258, 1
    %260 = vsyncpa [#allocation6], 1
    %s261 = scalar_lea.sflag [#allocation6], 1
    %262 = vsyncpa %s261, 1
    %263 = vsyncpa [#allocation4], 1
    %s264 = scalar_lea.sflag [#allocation4], 1
    %265 = vsyncpa %s264, 1

</llo_original>
